<compile_context>
chip_gen: v6e
topology: v6e:2x2x1
jax: 0.10.0
libtpu: 0.0.40
codegen_flags: <defaults>
</compile_context>

<pallas_src>
import jax
import jax.numpy as jnp
from jax.experimental import pallas as pl
from jax.experimental.pallas import tpu as pltpu


def _round_up(x, m):
    return ((x + m - 1) // m) * m


def _spec(shape, index_map, buffers=None):
    """BlockSpec helper that optionally pins the pipeline buffer count.

    buffers=1 for grid-constant weights (fetched once, never swapped), buffers=3
    for features if DMA is exposed.  Falls back to the default double-buffered
    spec if this JAX build does not expose pipeline_mode / Buffered, so the
    script always runs.
    """
    if buffers is None or buffers == 2:
        return pl.BlockSpec(shape, index_map)
    try:
        return pl.BlockSpec(shape, index_map,
                            pipeline_mode=pl.Buffered(buffer_count=buffers))
    except TypeError:
        return pl.BlockSpec(shape, index_map)


def _vmem_cap_bytes():
    """Physical-VMEM-aware cap: ~64 MiB default (safe on v7x), up to ~96 MiB on
    128 MiB parts (v5e/v6e), always leaving headroom for compiler scratch."""
    cap = 64 << 20
    try:
        info = pltpu.get_tpu_info()
        phys = int(getattr(info, "vmem_capacity_bytes", 64 << 20))
        cap = min(max(phys - (phys // 4), 48 << 20), 96 << 20)
    except Exception:
        pass
    return cap


def attention_fusion_kernel(f1_ref, f2_ref, w1a_ref, w1b_ref, b1_ref,
                            w2r_ref, b2d_ref, out_ref):
    f1 = f1_ref[...]
    f2 = f2_ref[...]

    # Linear(feature_dim*2 -> 512) on cat(f1, f2) via the split-weight trick.
    # Operands already arrive in the matmul dtype when stream_dtype == matmul_dtype.
    mm_dtype = w1a_ref.dtype
    f1_mm = f1 if f1.dtype == mm_dtype else f1.astype(mm_dtype)
    f2_mm = f2 if f2.dtype == mm_dtype else f2.astype(mm_dtype)
    h = (jnp.dot(f1_mm, w1a_ref[...], preferred_element_type=jnp.float32)
         + jnp.dot(f2_mm, w1b_ref[...], preferred_element_type=jnp.float32)
         + b1_ref[...])
    h = jnp.maximum(h, 0.0)  # ReLU (f32 on the VPU)

    # Linear(512 -> 2) + Softmax(dim=1), folded: softmax([l0, l1])[0] == sigmoid(l0 - l1).
    # 1-wide head done as VPU multiply + XLU lane reduction (keeps it off the MXU).
    delta = jnp.sum(h * w2r_ref[...], axis=-1, keepdims=True) + b2d_ref[0]
    attn0 = 1.0 / (1.0 + jnp.exp(-delta))      # EUP exp, one per row

    # Single upcast for the f32 epilogue; attn0*f1 + (1-attn0)*f2 == f2 + attn0*(f1-f2).
    f1_f32 = f1.astype(jnp.float32)
    f2_f32 = f2.astype(jnp.float32)
    out_ref[...] = (f2_f32 + attn0 * (f1_f32 - f2_f32)).astype(out_ref.dtype)


def attention_fusion(feat1, feat2, w1, b1, w2, b2, *,
                     tile_b=512,
                     matmul_dtype=jnp.bfloat16,
                     stream_dtype=jnp.bfloat16,
                     feat_buffers=2):
    """feat1, feat2: [B, D]; w1: [2D, 512]; b1: [512]; w2: [512, 2]; b2: [2].

    stream_dtype: dtype of the feature tiles (and output) moved over HBM.
      bf16 halves bandwidth on this mem-bound kernel; pass jnp.float32 for the
      bit-faithful module semantics.
    matmul_dtype: MXU operand dtype for the first layer (f32 accumulate always).
    """
    B, D = feat1.shape
    H = w1.shape[1]  # 512
    stream_dt = jnp.dtype(stream_dtype)
    mm_dt = jnp.dtype(matmul_dtype)

    # Batch tile: multiple of 256 at production sizes (MXU M width, bf16 packing);
    # clamp so >=2 grid blocks exist when B is big enough to split across the two
    # v7x TensorCores.  Toy batches collapse to a single full-array block.
    if B >= 256:
        TILE_B = _round_up(min(max(tile_b, 256), B), 256)
        if B >= 512 and pl.cdiv(B, TILE_B) < 2:
            TILE_B = _round_up(pl.cdiv(B, 2), 256)
    else:
        TILE_B = _round_up(B, 8)
    num_blocks = pl.cdiv(B, TILE_B)

    # Weight prep (once, in the wrapper).
    w1a = w1[:D, :].astype(mm_dt)                              # [D, H]
    w1b = w1[D:, :].astype(mm_dt)                              # [D, H]
    b1_2d = b1.reshape(1, H).astype(jnp.float32)               # [1, H]
    w2_row = (w2[:, 0] - w2[:, 1]).reshape(1, H).astype(jnp.float32)  # [1, H]
    b2_diff = (b2[0] - b2[1]).reshape(1).astype(jnp.float32)   # [1] scalar -> SMEM

    # Stream features in the requested dtype (bf16 by default).
    f1s = feat1 if feat1.dtype == stream_dt else feat1.astype(stream_dt)
    f2s = feat2 if feat2.dtype == stream_dt else feat2.astype(stream_dt)

    stream_bytes = stream_dt.itemsize
    mm_bytes = mm_dt.itemsize

    # VMEM budget: single-buffered weights + N-buffered feature tiles + double-
    # buffered output tile + in-kernel temporaries (f32 upcasts, optional matmul-
    # dtype casts, f32 hidden activation).
    weight_bytes = 2 * D * H * mm_bytes + 2 * H * 4
    tile_elems = TILE_B * D
    tile_bytes = (2 * feat_buffers + 2) * tile_elems * stream_bytes
    scratch_bytes = 2 * tile_elems * 4 + TILE_B * H * 4
    if stream_dt != mm_dt:
        scratch_bytes += 2 * tile_elems * mm_bytes
    vmem_est = weight_bytes + tile_bytes + scratch_bytes
    vmem_limit = int(min(_vmem_cap_bytes(), max(32 << 20, int(1.25 * vmem_est))))

    cost = pl.CostEstimate(
        flops=2 * B * (2 * D) * H + 2 * B * H + 6 * B * D,
        transcendentals=B,
        bytes_accessed=3 * B * D * stream_bytes + 2 * D * H * mm_bytes + 2 * H * 4 + 4,
    )

    feat_buf = None if feat_buffers == 2 else feat_buffers
    feat_spec = _spec((TILE_B, D), lambda i: (i, 0), buffers=feat_buf)
    out_spec = pl.BlockSpec((TILE_B, D), lambda i: (i, 0))

    return pl.pallas_call(
        attention_fusion_kernel,
        out_shape=jax.ShapeDtypeStruct((B, D), stream_dt),
        grid=(num_blocks,),
        in_specs=[
            feat_spec,                                             # feat1 tile
            feat_spec,                                             # feat2 tile
            _spec((D, H), lambda i: (0, 0), buffers=1),            # W1a (resident)
            _spec((D, H), lambda i: (0, 0), buffers=1),            # W1b (resident)
            _spec((1, H), lambda i: (0, 0), buffers=1),            # b1
            _spec((1, H), lambda i: (0, 0), buffers=1),            # W2 logit-diff row
            pl.BlockSpec(memory_space=pltpu.MemorySpace.SMEM),     # b2 logit-diff scalar
        ],
        out_specs=out_spec,
        compiler_params=pltpu.CompilerParams(
            dimension_semantics=("parallel",),
            vmem_limit_bytes=vmem_limit,
        ),
        cost_estimate=cost,
    )(f1s, f2s, w1a, w1b, b1_2d, w2_row, b2_diff)


def attention_fusion_ref(feat1, feat2, w1, b1, w2, b2):
    fused = jnp.concatenate([feat1, feat2], axis=1)
    h = jnp.maximum(fused @ w1 + b1, 0.0)
    logits = h @ w2 + b2
    weights = jax.nn.softmax(logits, axis=1)
    return weights[:, 0:1] * feat1 + weights[:, 1:2] * feat2


if __name__ == "__main__":
    B = 8            # batch (toy; production batches use 256/512-row tiles)
    D = 128          # feature_dim (small, instead of the default 2048)
    H = 512          # hidden dim of the attention MLP (fixed by the module)
    NW = 2           # number of fusion weights (fixed by the module)

    key = jax.random.PRNGKey(0)
    k1, k2, k3, k4, k5, k6 = jax.random.split(key, 6)

    feat1 = jax.random.normal(k1, (B, D), dtype=jnp.float32)
    feat2 = jax.random.normal(k2, (B, D), dtype=jnp.float32)

    # Deterministic synthetic parameters (mimic small-scale Linear init).
    w1 = jax.random.normal(k3, (2 * D, H), dtype=jnp.float32) * (1.0 / jnp.sqrt(2 * D))
    b1 = jax.random.normal(k4, (H,), dtype=jnp.float32) * 0.01
    w2 = jax.random.normal(k5, (H, NW), dtype=jnp.float32) * (1.0 / jnp.sqrt(H))
    b2 = jax.random.normal(k6, (NW,), dtype=jnp.float32) * 0.01

    ref = attention_fusion_ref(feat1, feat2, w1, b1, w2, b2)

    # Exact-precision mode (f32 streaming + f32 MXU): tight check vs reference.
    out_f32 = attention_fusion(feat1, feat2, w1, b1, w2, b2,
                               matmul_dtype=jnp.float32,
                               stream_dtype=jnp.float32)
    out_f32 = jax.block_until_ready(out_f32)
    assert out_f32.shape == (B, D) and out_f32.dtype == jnp.float32
    assert jnp.allclose(out_f32, ref, atol=1e-4, rtol=1e-4), "f32 mismatch vs reference"

    # Production mode (bf16 streamed features/output, bf16 MXU, f32 accumulate/epilogue).
    out_bf16 = attention_fusion(feat1, feat2, w1, b1, w2, b2,
                                matmul_dtype=jnp.bfloat16,
                                stream_dtype=jnp.bfloat16)
    out_bf16 = jax.block_until_ready(out_bf16)
    assert out_bf16.shape == (B, D) and out_bf16.dtype == jnp.bfloat16
    assert jnp.allclose(out_bf16.astype(jnp.float32), ref, atol=7.5e-2, rtol=7.5e-2), \
        "bf16 mismatch vs reference"

    print("KERNEL_OK")
</pallas_src>

<mosaic_0001>
module attributes {stable_mosaic.version = 11 : i64} {
  func.func @attention_fusion_kernel(%arg0: i32, %arg1: memref<8x128xf32, #tpu.memory_space<vmem>>, %arg2: memref<8x128xf32, #tpu.memory_space<vmem>>, %arg3: memref<128x512xf32, #tpu.memory_space<vmem>>, %arg4: memref<128x512xf32, #tpu.memory_space<vmem>>, %arg5: memref<1x512xf32, #tpu.memory_space<vmem>>, %arg6: memref<1x512xf32, #tpu.memory_space<vmem>>, %arg7: memref<1xf32, #tpu.memory_space<smem>>, %arg8: memref<8x128xf32, #tpu.memory_space<vmem>>) attributes {dimension_semantics = [#tpu.dimension_semantics<parallel>], iteration_bounds = array<i64: 1>, scalar_prefetch = 0 : i64, scratch_operands = 0 : i64, tpu.core_type = #tpu.core_type<tc>, window_params = [{transform_indices = @transform_0, window_bounds = array<i64: 8, 128>}, {transform_indices = @transform_1, window_bounds = array<i64: 8, 128>}, {pipeline_mode = #tpu.pipeline_mode<synchronous>, transform_indices = @transform_2, window_bounds = array<i64: 128, 512>}, {pipeline_mode = #tpu.pipeline_mode<synchronous>, transform_indices = @transform_3, window_bounds = array<i64: 128, 512>}, {pipeline_mode = #tpu.pipeline_mode<synchronous>, transform_indices = @transform_4, window_bounds = array<i64: 1, 512>}, {pipeline_mode = #tpu.pipeline_mode<synchronous>, transform_indices = @transform_5, window_bounds = array<i64: 1, 512>}, {transform_indices = @transform_6, window_bounds = array<i64: 1>}, {transform_indices = @transform_7, window_bounds = array<i64: 8, 128>}]} {
    %c0 = arith.constant 0 : index
    %c0_0 = arith.constant 0 : index
    %0 = vector.load %arg1[%c0, %c0_0] : memref<8x128xf32, #tpu.memory_space<vmem>>, vector<8x128xf32>
    %c0_1 = arith.constant 0 : index
    %c0_2 = arith.constant 0 : index
    %1 = vector.load %arg2[%c0_1, %c0_2] : memref<8x128xf32, #tpu.memory_space<vmem>>, vector<8x128xf32>
    %c0_3 = arith.constant 0 : index
    %c0_4 = arith.constant 0 : index
    %2 = vector.load %arg3[%c0_3, %c0_4] : memref<128x512xf32, #tpu.memory_space<vmem>>, vector<128x512xf32>
    %cst = arith.constant dense<0.000000e+00> : vector<8x512xf32>
    %3 = tpu.matmul %0, %2, %cst {dimension_numbers = #tpu.dot_dimension_numbers<[1], [0], [0], [1], [0, 0, 1, 1], [], []>} : vector<8x128xf32>, vector<128x512xf32>, vector<8x512xf32> -> vector<8x512xf32>
    %c0_5 = arith.constant 0 : index
    %c0_6 = arith.constant 0 : index
    %4 = vector.load %arg4[%c0_5, %c0_6] : memref<128x512xf32, #tpu.memory_space<vmem>>, vector<128x512xf32>
    %cst_7 = arith.constant dense<0.000000e+00> : vector<8x512xf32>
    %5 = tpu.matmul %1, %4, %cst_7 {dimension_numbers = #tpu.dot_dimension_numbers<[1], [0], [0], [1], [0, 0, 1, 1], [], []>} : vector<8x128xf32>, vector<128x512xf32>, vector<8x512xf32> -> vector<8x512xf32>
    %6 = arith.addf %3, %5 : vector<8x512xf32>
    %c0_8 = arith.constant 0 : index
    %c0_9 = arith.constant 0 : index
    %7 = vector.load %arg5[%c0_8, %c0_9] : memref<1x512xf32, #tpu.memory_space<vmem>>, vector<1x512xf32>
    %8 = vector.broadcast %7 : vector<1x512xf32> to vector<8x512xf32>
    %9 = arith.addf %6, %8 : vector<8x512xf32>
    %cst_10 = arith.constant 0.000000e+00 : f32
    %10 = vector.broadcast %cst_10 : f32 to vector<8x512xf32>
    %11 = arith.maximumf %9, %10 : vector<8x512xf32>
    %c0_11 = arith.constant 0 : index
    %c0_12 = arith.constant 0 : index
    %12 = vector.load %arg6[%c0_11, %c0_12] : memref<1x512xf32, #tpu.memory_space<vmem>>, vector<1x512xf32>
    %13 = vector.broadcast %12 : vector<1x512xf32> to vector<8x512xf32>
    %14 = arith.mulf %11, %13 : vector<8x512xf32>
    %cst_13 = arith.constant dense<0.000000e+00> : vector<8xf32>
    %15 = vector.multi_reduction <add>, %14, %cst_13 [1] : vector<8x512xf32> to vector<8xf32>
    %16 = vector.shape_cast %15 : vector<8xf32> to vector<8x1xf32>
    %c0_14 = arith.constant 0 : index
    %17 = memref.load %arg7[%c0_14] : memref<1xf32, #tpu.memory_space<smem>>
    %18 = vector.broadcast %17 : f32 to vector<8x1xf32>
    %19 = arith.addf %16, %18 : vector<8x1xf32>
    %cst_15 = arith.constant 0.000000e+00 : f32
    %20 = vector.broadcast %cst_15 : f32 to vector<8x1xf32>
    %21 = arith.subf %20, %19 : vector<8x1xf32>
    %22 = math.exp %21 : vector<8x1xf32>
    %cst_16 = arith.constant 1.000000e+00 : f32
    %23 = vector.broadcast %cst_16 : f32 to vector<8x1xf32>
    %24 = arith.addf %23, %22 : vector<8x1xf32>
    %cst_17 = arith.constant 1.000000e+00 : f32
    %25 = vector.broadcast %cst_17 : f32 to vector<8x1xf32>
    %26 = arith.divf %25, %24 : vector<8x1xf32>
    %27 = arith.subf %0, %1 : vector<8x128xf32>
    %28 = vector.broadcast %26 : vector<8x1xf32> to vector<8x128xf32>
    %29 = arith.mulf %28, %27 : vector<8x128xf32>
    %30 = arith.addf %1, %29 : vector<8x128xf32>
    %c0_18 = arith.constant 0 : index
    %c0_19 = arith.constant 0 : index
    %31 = vector.load %arg8[%c0_18, %c0_19] : memref<8x128xf32, #tpu.memory_space<vmem>>, vector<8x128xf32>
    tpu.vector_store %arg8[%c0_18, %c0_19], %30 {strides = array<i32>} : memref<8x128xf32, #tpu.memory_space<vmem>>, vector<8x128xf32>,
    return
  }
  func.func @transform_0(%arg0: i32) -> (i32, i32) {
    %c0_i32 = arith.constant 0 : i32
    %c0_i32_0 = arith.constant 0 : i32
    return %arg0, %c0_i32 : i32, i32
  }
  func.func @transform_1(%arg0: i32) -> (i32, i32) {
    %c0_i32 = arith.constant 0 : i32
    %c0_i32_0 = arith.constant 0 : i32
    return %arg0, %c0_i32 : i32, i32
  }
  func.func @transform_2(%arg0: i32) -> (i32, i32) {
    %c0_i32 = arith.constant 0 : i32
    %c0_i32_0 = arith.constant 0 : i32
    %c0_i32_1 = arith.constant 0 : i32
    return %c0_i32, %c0_i32_0 : i32, i32
  }
  func.func @transform_3(%arg0: i32) -> (i32, i32) {
    %c0_i32 = arith.constant 0 : i32
    %c0_i32_0 = arith.constant 0 : i32
    %c0_i32_1 = arith.constant 0 : i32
    return %c0_i32, %c0_i32_0 : i32, i32
  }
  func.func @transform_4(%arg0: i32) -> (i32, i32) {
    %c0_i32 = arith.constant 0 : i32
    %c0_i32_0 = arith.constant 0 : i32
    %c0_i32_1 = arith.constant 0 : i32
    return %c0_i32, %c0_i32_0 : i32, i32
  }
  func.func @transform_5(%arg0: i32) -> (i32, i32) {
    %c0_i32 = arith.constant 0 : i32
    %c0_i32_0 = arith.constant 0 : i32
    %c0_i32_1 = arith.constant 0 : i32
    return %c0_i32, %c0_i32_0 : i32, i32
  }
  func.func @transform_6(%arg0: i32) -> i32 {
    %c0_i32 = arith.constant 0 : i32
    %c0_i32_0 = arith.constant 0 : i32
    return %c0_i32 : i32
  }
  func.func @transform_7(%arg0: i32) -> (i32, i32) {
    %c0_i32 = arith.constant 0 : i32
    %c0_i32_0 = arith.constant 0 : i32
    return %arg0, %c0_i32 : i32, i32
  }
}

</mosaic_0001>

<llo_original>
// kernel: tpu_custom_call.1
$region0: #{tpu_custom_call.1}
  #allocation0 [shape = 'u32[]', space=smem, size = 0x4, offset = 0x4, fixed_abs, tag = 'smem constant byte address 0x4 - core index']
  #allocation1 [shape = 'u32[144,128]{1,0:T(1,128)}', space=vmem, size = 0x12000, scoped, tag = 'internal scratch']
  #allocation2 [shape = 'f32[1]{0:T(128)S(6)}', space=smem, size = 0x200, scoped, tag = 'scoped memory for tpu_custom_call.1']
  %s0 = inlined_call_operand.hbm [shape: f32[8,128], index: 0, kind: input, shape index: {}]
  %s1 = inlined_call_operand.hbm [shape: f32[8,128], index: 1, kind: input, shape index: {}]
  %s2 = inlined_call_operand.hbm [shape: f32[128,512], index: 2, kind: input, shape index: {}]
  %s3 = inlined_call_operand.hbm [shape: f32[128,512], index: 3, kind: input, shape index: {}]
  %s4 = inlined_call_operand.vmem [shape: f32[1,512], index: 4, kind: input, shape index: {}]
  %s5 = inlined_call_operand.vmem [shape: f32[1,512], index: 5, kind: input, shape index: {}]
  %s6 = inlined_call_operand.<no memory space> [shape: f32[1], index: 6, kind: input, shape index: {}]
  %s7 = inlined_call_operand.hbm [shape: f32[8,128], index: 7, kind: output, shape index: {}]
  %s8 = sld [smem:[#allocation0]]
  $region54: #{tpu_custom_call.1} parent=0
    _
  %s10 = ssub.s32 1, %s8
  %s11 = scalar_select 0, %s10, %s8
  %12 = sst [smem:[#allocation2]] %s6
  $region1: #{tpu_custom_call.1} parent=0
    #allocation3 [shape = 'u8[4096]{0}', space=vmem, size = 0x1000, scoped, tag = 'input window, operand 0, single buffered']
    #allocation4 [shape = 's32[1]{0}', space=sflag, size = 0x4, scoped, tag = 'scoped memory for tpu_custom_call.1']
    #allocation5 [shape = 's32[1]{0}', space=sflag, size = 0x4, scoped, tag = 'scoped memory for tpu_custom_call.1']
    #allocation6 [shape = 'u8[4096]{0}', space=vmem, size = 0x1000, scoped, tag = 'input window, operand 1, single buffered']
    #allocation7 [shape = 's32[1]{0}', space=sflag, size = 0x4, scoped, tag = 'scoped memory for tpu_custom_call.1']
    #allocation8 [shape = 'u8[262144]{0}', space=vmem, size = 0x40000, scoped, tag = 'input window, operand 2, single buffered']
    #allocation9 [shape = 'u8[262144]{0}', space=vmem, size = 0x40000, scoped, tag = 'input window, operand 3, single buffered']
    #allocation10 [shape = 's32[1]{0}', space=sflag, size = 0x4, scoped, tag = 'scoped memory for tpu_custom_call.1']
    #allocation11 [shape = 'u8[4096]{0}', space=vmem, size = 0x1000, scoped, tag = 'output window, operand 0, single buffered']
    %13 = vsyncpa [#allocation4], 0
    %14 = vsyncpa [#allocation7], 0
    %15 = vsyncpa [#allocation10], 0
    %16 = vsyncpa [#allocation5], 0
    // Predicated region
    $region2: #{tpu_custom_call.1} parent=1 // pred_check
      _
    $region3: #{tpu_custom_call.1} parent=1 // pred_check_branch
      %18 = sbr.rel (0) target = $region5
    $region4: #{tpu_custom_call.1} parent=1 // pred_region
      %s20 = ssub.s32 128, 128
      %21 = vsyncadd [#allocation4], %s20
      %s23 = sshll.u32 [#allocation3], 4
      %s24 = int_to_ptr.vmem [resolvable:$true] %s23
      %26 = dma.hbm_to_vmem [thread:$0]  %s0, 128, %s24, [#allocation4]
    $region5: #{tpu_custom_call.1} parent=1 // pred_fallthru
      _
    // Predicated region
    $region6: #{tpu_custom_call.1} parent=1 // pred_check
      _
    $region7: #{tpu_custom_call.1} parent=1 // pred_check_branch
      %28 = sbr.rel (0) target = $region9
    $region8: #{tpu_custom_call.1} parent=1 // pred_region
      %s30 = ssub.s32 128, 128
      %31 = vsyncadd [#allocation7], %s30
      %s33 = sshll.u32 [#allocation6], 4
      %s34 = int_to_ptr.vmem [resolvable:$true] %s33
      %36 = dma.hbm_to_vmem [thread:$0]  %s1, 128, %s34, [#allocation7]
    $region9: #{tpu_custom_call.1} parent=1 // pred_fallthru
      _
    // Predicated region
    $region10: #{tpu_custom_call.1} parent=1 // pred_check
      _
    $region11: #{tpu_custom_call.1} parent=1 // pred_check_branch
      %38 = sbr.rel (0) target = $region13
    $region12: #{tpu_custom_call.1} parent=1 // pred_region
      %s40 = ssub.s32 8192, 8192
      %41 = vsyncadd [#allocation7], %s40
      %s42 = sshll.u32 [#allocation8], 4
      %s43 = int_to_ptr.vmem [resolvable:$true] %s42
      %48 = dma.hbm_to_vmem [thread:$0]  %s2, 8192, %s43, [#allocation7], 512, 512, 32
    $region13: #{tpu_custom_call.1} parent=1 // pred_fallthru
      _
    // Predicated region
    $region14: #{tpu_custom_call.1} parent=1 // pred_check
      _
    $region15: #{tpu_custom_call.1} parent=1 // pred_check_branch
      %50 = sbr.rel (0) target = $region17
    $region16: #{tpu_custom_call.1} parent=1 // pred_region
      %s52 = ssub.s32 8192, 8192
      %53 = vsyncadd [#allocation10], %s52
      %s54 = sshll.u32 [#allocation9], 4
      %s55 = int_to_ptr.vmem [resolvable:$true] %s54
      %60 = dma.hbm_to_vmem [thread:$0]  %s3, 8192, %s55, [#allocation10], 512, 512, 32
    $region17: #{tpu_custom_call.1} parent=1 // pred_fallthru
      _
    // Predicated region
    $region18: #{tpu_custom_call.1} parent=1 // pred_check
      _
    $region19: #{tpu_custom_call.1} parent=1 // pred_check_branch
      %62 = sbr.rel (0) target = $region21
    $region20: #{tpu_custom_call.1} parent=1 // pred_region
      _
    $region21: #{tpu_custom_call.1} parent=1 // pred_fallthru
      _
    // Predicated region
    $region22: #{tpu_custom_call.1} parent=1 // pred_check
      _
    $region23: #{tpu_custom_call.1} parent=1 // pred_check_branch
      %64 = sbr.rel (0) target = $region25
    $region24: #{tpu_custom_call.1} parent=1 // pred_region
      _
    $region25: #{tpu_custom_call.1} parent=1 // pred_fallthru
      _
    // Predicated region
    $region26: #{tpu_custom_call.1} parent=1 // pred_check
      _
    $region27: #{tpu_custom_call.1} parent=1 // pred_check_branch
      %66 = sbr.rel (0) target = $region29
    $region28: #{tpu_custom_call.1} parent=1 // pred_region
      _
    $region29: #{tpu_custom_call.1} parent=1 // pred_fallthru
      _
    // Predicated region
    $region30: #{tpu_custom_call.1} parent=1 // pred_check
      _
    $region31: #{tpu_custom_call.1} parent=1 // pred_check_branch
      %68 = sbr.rel (0) target = $region33
    $region32: #{tpu_custom_call.1} parent=1 // pred_region
      %69 = dma.done [#allocation4], 128
    $region33: #{tpu_custom_call.1} parent=1 // pred_fallthru
      _
    // Predicated region
    $region34: #{tpu_custom_call.1} parent=1 // pred_check
      _
    $region35: #{tpu_custom_call.1} parent=1 // pred_check_branch
      %71 = sbr.rel (0) target = $region37
    $region36: #{tpu_custom_call.1} parent=1 // pred_region
      %72 = dma.done [#allocation7], 128
    $region37: #{tpu_custom_call.1} parent=1 // pred_fallthru
      _
    // Predicated region
    $region38: #{tpu_custom_call.1} parent=1 // pred_check
      _
    $region39: #{tpu_custom_call.1} parent=1 // pred_check_branch
      %74 = sbr.rel (0) target = $region41
    $region40: #{tpu_custom_call.1} parent=1 // pred_region
      %75 = dma.done [#allocation7], 8192
    $region41: #{tpu_custom_call.1} parent=1 // pred_fallthru
      _
    // Predicated region
    $region42: #{tpu_custom_call.1} parent=1 // pred_check
      _
    $region43: #{tpu_custom_call.1} parent=1 // pred_check_branch
      %77 = sbr.rel (0) target = $region45
    $region44: #{tpu_custom_call.1} parent=1 // pred_region
      %78 = dma.done [#allocation10], 8192
    $region45: #{tpu_custom_call.1} parent=1 // pred_fallthru
      _
    %v79 = vld [vmem:[#allocation3] sm:$0xff]
    %v80 = vld [vmem:[#allocation6] sm:$0xff]
    %v81 = vld [vmem:[#allocation8] sm:$0xff]
    %v82 = vld [vmem:[#allocation8 + $0x8] sm:$0xff]
    %v83 = vld [vmem:[#allocation8 + $0x10] sm:$0xff]
    %v84 = vld [vmem:[#allocation8 + $0x18] sm:$0xff]
    %v85 = vld [vmem:[#allocation8 + $0x20] sm:$0xff]
    %v86 = vld [vmem:[#allocation8 + $0x28] sm:$0xff]
    %v87 = vld [vmem:[#allocation8 + $0x30] sm:$0xff]
    %v88 = vld [vmem:[#allocation8 + $0x38] sm:$0xff]
    %v89 = vld [vmem:[#allocation8 + $0x40] sm:$0xff]
    %v90 = vld [vmem:[#allocation8 + $0x48] sm:$0xff]
    %v91 = vld [vmem:[#allocation8 + $0x50] sm:$0xff]
    %v92 = vld [vmem:[#allocation8 + $0x58] sm:$0xff]
    %v93 = vld [vmem:[#allocation8 + $0x60] sm:$0xff]
    %v94 = vld [vmem:[#allocation8 + $0x68] sm:$0xff]
    %v95 = vld [vmem:[#allocation8 + $0x70] sm:$0xff]
    %v96 = vld [vmem:[#allocation8 + $0x78] sm:$0xff]
    %v97 = vld [vmem:[#allocation8 + $0x80] sm:$0xff]
    %v98 = vld [vmem:[#allocation8 + $0x88] sm:$0xff]
    %v99 = vld [vmem:[#allocation8 + $0x90] sm:$0xff]
    %v100 = vld [vmem:[#allocation8 + $0x98] sm:$0xff]
    %v101 = vld [vmem:[#allocation8 + $0xa0] sm:$0xff]
    %v102 = vld [vmem:[#allocation8 + $0xa8] sm:$0xff]
    %v103 = vld [vmem:[#allocation8 + $0xb0] sm:$0xff]
    %v104 = vld [vmem:[#allocation8 + $0xb8] sm:$0xff]
    %v105 = vld [vmem:[#allocation8 + $0xc0] sm:$0xff]
    %v106 = vld [vmem:[#allocation8 + $0xc8] sm:$0xff]
    %v107 = vld [vmem:[#allocation8 + $0xd0] sm:$0xff]
    %v108 = vld [vmem:[#allocation8 + $0xd8] sm:$0xff]
    %v109 = vld [vmem:[#allocation8 + $0xe0] sm:$0xff]
    %v110 = vld [vmem:[#allocation8 + $0xe8] sm:$0xff]
    %v111 = vld [vmem:[#allocation8 + $0xf0] sm:$0xff]
    %v112 = vld [vmem:[#allocation8 + $0xf8] sm:$0xff]
    %v113 = vld [vmem:[#allocation8 + $0x100] sm:$0xff]
    %v114 = vld [vmem:[#allocation8 + $0x108] sm:$0xff]
    %v115 = vld [vmem:[#allocation8 + $0x110] sm:$0xff]
    %v116 = vld [vmem:[#allocation8 + $0x118] sm:$0xff]
    %v117 = vld [vmem:[#allocation8 + $0x120] sm:$0xff]
    %v118 = vld [vmem:[#allocation8 + $0x128] sm:$0xff]
    %v119 = vld [vmem:[#allocation8 + $0x130] sm:$0xff]
    %v120 = vld [vmem:[#allocation8 + $0x138] sm:$0xff]
    %v121 = vld [vmem:[#allocation8 + $0x140] sm:$0xff]
    %v122 = vld [vmem:[#allocation8 + $0x148] sm:$0xff]
    %v123 = vld [vmem:[#allocation8 + $0x150] sm:$0xff]
    %v124 = vld [vmem:[#allocation8 + $0x158] sm:$0xff]
    %v125 = vld [vmem:[#allocation8 + $0x160] sm:$0xff]
    %v126 = vld [vmem:[#allocation8 + $0x168] sm:$0xff]
    %v127 = vld [vmem:[#allocation8 + $0x170] sm:$0xff]
    %v128 = vld [vmem:[#allocation8 + $0x178] sm:$0xff]
    %v129 = vld [vmem:[#allocation8 + $0x180] sm:$0xff]
    %v130 = vld [vmem:[#allocation8 + $0x188] sm:$0xff]
    %v131 = vld [vmem:[#allocation8 + $0x190] sm:$0xff]
    %v132 = vld [vmem:[#allocation8 + $0x198] sm:$0xff]
    %v133 = vld [vmem:[#allocation8 + $0x1a0] sm:$0xff]
    %v134 = vld [vmem:[#allocation8 + $0x1a8] sm:$0xff]
    %v135 = vld [vmem:[#allocation8 + $0x1b0] sm:$0xff]
    %v136 = vld [vmem:[#allocation8 + $0x1b8] sm:$0xff]
    %v137 = vld [vmem:[#allocation8 + $0x1c0] sm:$0xff]
    %v138 = vld [vmem:[#allocation8 + $0x1c8] sm:$0xff]
    %v139 = vld [vmem:[#allocation8 + $0x1d0] sm:$0xff]
    %v140 = vld [vmem:[#allocation8 + $0x1d8] sm:$0xff]
    %v141 = vld [vmem:[#allocation8 + $0x1e0] sm:$0xff]
    %v142 = vld [vmem:[#allocation8 + $0x1e8] sm:$0xff]
    %v143 = vld [vmem:[#allocation8 + $0x1f0] sm:$0xff]
    %v144 = vld [vmem:[#allocation8 + $0x1f8] sm:$0xff]
    %v145 = vld [vmem:[#allocation9] sm:$0xff]
    %v146 = vld [vmem:[#allocation9 + $0x8] sm:$0xff]
    %v147 = vld [vmem:[#allocation9 + $0x10] sm:$0xff]
    %v148 = vld [vmem:[#allocation9 + $0x18] sm:$0xff]
    %v149 = vld [vmem:[#allocation9 + $0x20] sm:$0xff]
    %v150 = vld [vmem:[#allocation9 + $0x28] sm:$0xff]
    %v151 = vld [vmem:[#allocation9 + $0x30] sm:$0xff]
    %v152 = vld [vmem:[#allocation9 + $0x38] sm:$0xff]
    %v153 = vld [vmem:[#allocation9 + $0x40] sm:$0xff]
    %v154 = vld [vmem:[#allocation9 + $0x48] sm:$0xff]
    %v155 = vld [vmem:[#allocation9 + $0x50] sm:$0xff]
    %v156 = vld [vmem:[#allocation9 + $0x58] sm:$0xff]
    %v157 = vld [vmem:[#allocation9 + $0x60] sm:$0xff]
    %v158 = vld [vmem:[#allocation9 + $0x68] sm:$0xff]
    %v159 = vld [vmem:[#allocation9 + $0x70] sm:$0xff]
    %v160 = vld [vmem:[#allocation9 + $0x78] sm:$0xff]
    %v161 = vld [vmem:[#allocation9 + $0x80] sm:$0xff]
    %v162 = vld [vmem:[#allocation9 + $0x88] sm:$0xff]
    %v163 = vld [vmem:[#allocation9 + $0x90] sm:$0xff]
    %v164 = vld [vmem:[#allocation9 + $0x98] sm:$0xff]
    %v165 = vld [vmem:[#allocation9 + $0xa0] sm:$0xff]
    %v166 = vld [vmem:[#allocation9 + $0xa8] sm:$0xff]
    %v167 = vld [vmem:[#allocation9 + $0xb0] sm:$0xff]
    %v168 = vld [vmem:[#allocation9 + $0xb8] sm:$0xff]
    %v169 = vld [vmem:[#allocation9 + $0xc0] sm:$0xff]
    %v170 = vld [vmem:[#allocation9 + $0xc8] sm:$0xff]
    %v171 = vld [vmem:[#allocation9 + $0xd0] sm:$0xff]
    %v172 = vld [vmem:[#allocation9 + $0xd8] sm:$0xff]
    %v173 = vld [vmem:[#allocation9 + $0xe0] sm:$0xff]
    %v174 = vld [vmem:[#allocation9 + $0xe8] sm:$0xff]
    %v175 = vld [vmem:[#allocation9 + $0xf0] sm:$0xff]
    %v176 = vld [vmem:[#allocation9 + $0xf8] sm:$0xff]
    %v177 = vld [vmem:[#allocation9 + $0x100] sm:$0xff]
    %v178 = vld [vmem:[#allocation9 + $0x108] sm:$0xff]
    %v179 = vld [vmem:[#allocation9 + $0x110] sm:$0xff]
    %v180 = vld [vmem:[#allocation9 + $0x118] sm:$0xff]
    %v181 = vld [vmem:[#allocation9 + $0x120] sm:$0xff]
    %v182 = vld [vmem:[#allocation9 + $0x128] sm:$0xff]
    %v183 = vld [vmem:[#allocation9 + $0x130] sm:$0xff]
    %v184 = vld [vmem:[#allocation9 + $0x138] sm:$0xff]
    %v185 = vld [vmem:[#allocation9 + $0x140] sm:$0xff]
    %v186 = vld [vmem:[#allocation9 + $0x148] sm:$0xff]
    %v187 = vld [vmem:[#allocation9 + $0x150] sm:$0xff]
    %v188 = vld [vmem:[#allocation9 + $0x158] sm:$0xff]
    %v189 = vld [vmem:[#allocation9 + $0x160] sm:$0xff]
    %v190 = vld [vmem:[#allocation9 + $0x168] sm:$0xff]
    %v191 = vld [vmem:[#allocation9 + $0x170] sm:$0xff]
    %v192 = vld [vmem:[#allocation9 + $0x178] sm:$0xff]
    %v193 = vld [vmem:[#allocation9 + $0x180] sm:$0xff]
    %v194 = vld [vmem:[#allocation9 + $0x188] sm:$0xff]
    %v195 = vld [vmem:[#allocation9 + $0x190] sm:$0xff]
    %v196 = vld [vmem:[#allocation9 + $0x198] sm:$0xff]
    %v197 = vld [vmem:[#allocation9 + $0x1a0] sm:$0xff]
    %v198 = vld [vmem:[#allocation9 + $0x1a8] sm:$0xff]
    %v199 = vld [vmem:[#allocation9 + $0x1b0] sm:$0xff]
    %v200 = vld [vmem:[#allocation9 + $0x1b8] sm:$0xff]
    %v201 = vld [vmem:[#allocation9 + $0x1c0] sm:$0xff]
    %v202 = vld [vmem:[#allocation9 + $0x1c8] sm:$0xff]
    %v203 = vld [vmem:[#allocation9 + $0x1d0] sm:$0xff]
    %v204 = vld [vmem:[#allocation9 + $0x1d8] sm:$0xff]
    %v205 = vld [vmem:[#allocation9 + $0x1e0] sm:$0xff]
    %v206 = vld [vmem:[#allocation9 + $0x1e8] sm:$0xff]
    %v207 = vld [vmem:[#allocation9 + $0x1f0] sm:$0xff]
    %v208 = vld [vmem:[#allocation9 + $0x1f8] sm:$0xff]
    %209 = vmatprep.subr.mxu0 %v206
    %210 = vmatpush1.msra.mxu0 %v205
    %211 = vmatprep.subr.mxu0 %v202
    %212 = vmatpush1.msra.mxu0 %v201
    %213 = vmatprep.subr.mxu0 %v198
    %214 = vmatpush1.msra.mxu0 %v197
    %215 = vmatprep.subr.mxu0 %v194
    %216 = vmatpush1.msra.mxu0 %v193
    %217 = vmatprep.subr.mxu0 %v190
    %218 = vmatpush1.msra.mxu0 %v189
    %219 = vmatprep.subr.mxu0 %v186
    %220 = vmatpush1.msra.mxu0 %v185
    %221 = vmatprep.subr.mxu0 %v182
    %222 = vmatpush1.msra.mxu0 %v181
    %223 = vmatprep.subr.mxu0 %v178
    %224 = vmatpush1.msra.mxu0 %v177
    %225 = vmatprep.subr.mxu0 %v174
    %226 = vmatpush1.msra.mxu0 %v173
    %227 = vmatprep.subr.mxu0 %v170
    %228 = vmatpush1.msra.mxu0 %v169
    %229 = vmatprep.subr.mxu0 %v166
    %230 = vmatpush1.msra.mxu0 %v165
    %231 = vmatprep.subr.mxu0 %v162
    %232 = vmatpush1.msra.mxu0 %v161
    %233 = vmatprep.subr.mxu0 %v158
    %234 = vmatpush1.msra.mxu0 %v157
    %235 = vmatprep.subr.mxu0 %v154
    %236 = vmatpush1.msra.mxu0 %v153
    %237 = vmatprep.subr.mxu0 %v150
    %238 = vmatpush1.msra.mxu0 %v149
    %239 = vmatprep.subr.mxu0 %v146
    %240 = vmatpush1.msra.mxu0 %v145
    %241 = vmatprep.subr.mxu0 0.0
    %242 = vmatpush2.msra.mxu0 0.0
    %243 = vmatprep.subr.mxu0 0.0
    %244 = vmatpush2.msra.mxu0 0.0
    %245 = vmatprep.subr.mxu0 0.0
    %246 = vmatpush2.msra.mxu0 0.0
    %247 = vmatprep.subr.mxu0 0.0
    %248 = vmatpush2.msra.mxu0 0.0
    %249 = vmatprep.subr.mxu0 0.0
    %250 = vmatpush2.msra.mxu0 0.0
    %251 = vmatprep.subr.mxu0 0.0
    %252 = vmatpush2.msra.mxu0 0.0
    %253 = vmatprep.subr.mxu0 0.0
    %254 = vmatpush2.msra.mxu0 0.0
    %255 = vmatprep.subr.mxu0 0.0
    %256 = vmatpush2.msra.mxu0 0.0
    %257 = vmatprep.subr.mxu0 0.0
    %258 = vmatpush2.msra.mxu0 0.0
    %259 = vmatprep.subr.mxu0 0.0
    %260 = vmatpush2.msra.mxu0 0.0
    %261 = vmatprep.subr.mxu0 0.0
    %262 = vmatpush2.msra.mxu0 0.0
    %263 = vmatprep.subr.mxu0 0.0
    %264 = vmatpush2.msra.mxu0 0.0
    %265 = vmatprep.subr.mxu0 0.0
    %266 = vmatpush2.msra.mxu0 0.0
    %267 = vmatprep.subr.mxu0 0.0
    %268 = vmatpush2.msra.mxu0 0.0
    %269 = vmatprep.subr.mxu0 0.0
    %270 = vmatpush2.msra.mxu0 0.0
    %271 = vmatprep.subr.mxu0 0.0
    %272 = vmatpush2.msra.mxu0 0.0
    %273 = vmatprep.mubr.f32.mxu0 0.0
    %274 = vmatmul.mubr.f32.gmra.mxu0 %v80
    %v275 = vpop.f32.mrf.mxu0
    %v276 = vadd.f32 0.0, %v275
    %v277 = vpop.f32.mrf.mxu0
    %v278 = vadd.f32 0.0, %v277
    %279 = vdwg.mxu0
    %280 = vmatprep.subr.mxu0 %v208
    %281 = vmatpush1.msra.mxu0 %v207
    %282 = vmatprep.subr.mxu0 %v204
    %283 = vmatpush1.msra.mxu0 %v203
    %284 = vmatprep.subr.mxu0 %v200
    %285 = vmatpush1.msra.mxu0 %v199
    %286 = vmatprep.subr.mxu0 %v196
    %287 = vmatpush1.msra.mxu0 %v195
    %288 = vmatprep.subr.mxu0 %v192
    %289 = vmatpush1.msra.mxu0 %v191
    %290 = vmatprep.subr.mxu0 %v188
    %291 = vmatpush1.msra.mxu0 %v187
    %292 = vmatprep.subr.mxu0 %v184
    %293 = vmatpush1.msra.mxu0 %v183
    %294 = vmatprep.subr.mxu0 %v180
    %295 = vmatpush1.msra.mxu0 %v179
    %296 = vmatprep.subr.mxu0 %v176
    %297 = vmatpush1.msra.mxu0 %v175
    %298 = vmatprep.subr.mxu0 %v172
    %299 = vmatpush1.msra.mxu0 %v171
    %300 = vmatprep.subr.mxu0 %v168
    %301 = vmatpush1.msra.mxu0 %v167
    %302 = vmatprep.subr.mxu0 %v164
    %303 = vmatpush1.msra.mxu0 %v163
    %304 = vmatprep.subr.mxu0 %v160
    %305 = vmatpush1.msra.mxu0 %v159
    %306 = vmatprep.subr.mxu0 %v156
    %307 = vmatpush1.msra.mxu0 %v155
    %308 = vmatprep.subr.mxu0 %v152
    %309 = vmatpush1.msra.mxu0 %v151
    %310 = vmatprep.subr.mxu0 %v148
    %311 = vmatpush1.msra.mxu0 %v147
    %312 = vmatprep.subr.mxu0 0.0
    %313 = vmatpush2.msra.mxu0 0.0
    %314 = vmatprep.subr.mxu0 0.0
    %315 = vmatpush2.msra.mxu0 0.0
    %316 = vmatprep.subr.mxu0 0.0
    %317 = vmatpush2.msra.mxu0 0.0
    %318 = vmatprep.subr.mxu0 0.0
    %319 = vmatpush2.msra.mxu0 0.0
    %320 = vmatprep.subr.mxu0 0.0
    %321 = vmatpush2.msra.mxu0 0.0
    %322 = vmatprep.subr.mxu0 0.0
    %323 = vmatpush2.msra.mxu0 0.0
    %324 = vmatprep.subr.mxu0 0.0
    %325 = vmatpush2.msra.mxu0 0.0
    %326 = vmatprep.subr.mxu0 0.0
    %327 = vmatpush2.msra.mxu0 0.0
    %328 = vmatprep.subr.mxu0 0.0
    %329 = vmatpush2.msra.mxu0 0.0
    %330 = vmatprep.subr.mxu0 0.0
    %331 = vmatpush2.msra.mxu0 0.0
    %332 = vmatprep.subr.mxu0 0.0
    %333 = vmatpush2.msra.mxu0 0.0
    %334 = vmatprep.subr.mxu0 0.0
    %335 = vmatpush2.msra.mxu0 0.0
    %336 = vmatprep.subr.mxu0 0.0
    %337 = vmatpush2.msra.mxu0 0.0
    %338 = vmatprep.subr.mxu0 0.0
    %339 = vmatpush2.msra.mxu0 0.0
    %340 = vmatprep.subr.mxu0 0.0
    %341 = vmatpush2.msra.mxu0 0.0
    %342 = vmatprep.subr.mxu0 0.0
    %343 = vmatpush2.msra.mxu0 0.0
    %344 = vmatprep.mubr.f32.mxu0 0.0
    %345 = vmatmul.mubr.f32.gmra.mxu0 %v80
    %v346 = vpop.f32.mrf.mxu0
    %v347 = vadd.f32 0.0, %v346
    %v348 = vpop.f32.mrf.mxu0
    %v349 = vadd.f32 0.0, %v348
    %350 = vdwg.mxu0
    %351 = vmatprep.subr.mxu0 %v142
    %352 = vmatpush1.msra.mxu0 %v141
    %353 = vmatprep.subr.mxu0 %v138
    %354 = vmatpush1.msra.mxu0 %v137
    %355 = vmatprep.subr.mxu0 %v134
    %356 = vmatpush1.msra.mxu0 %v133
    %357 = vmatprep.subr.mxu0 %v130
    %358 = vmatpush1.msra.mxu0 %v129
    %359 = vmatprep.subr.mxu0 %v126
    %360 = vmatpush1.msra.mxu0 %v125
    %361 = vmatprep.subr.mxu0 %v122
    %362 = vmatpush1.msra.mxu0 %v121
    %363 = vmatprep.subr.mxu0 %v118
    %364 = vmatpush1.msra.mxu0 %v117
    %365 = vmatprep.subr.mxu0 %v114
    %366 = vmatpush1.msra.mxu0 %v113
    %367 = vmatprep.subr.mxu0 %v110
    %368 = vmatpush1.msra.mxu0 %v109
    %369 = vmatprep.subr.mxu0 %v106
    %370 = vmatpush1.msra.mxu0 %v105
    %371 = vmatprep.subr.mxu0 %v102
    %372 = vmatpush1.msra.mxu0 %v101
    %373 = vmatprep.subr.mxu0 %v98
    %374 = vmatpush1.msra.mxu0 %v97
    %375 = vmatprep.subr.mxu0 %v94
    %376 = vmatpush1.msra.mxu0 %v93
    %377 = vmatprep.subr.mxu0 %v90
    %378 = vmatpush1.msra.mxu0 %v89
    %379 = vmatprep.subr.mxu0 %v86
    %380 = vmatpush1.msra.mxu0 %v85
    %381 = vmatprep.subr.mxu0 %v82
    %382 = vmatpush1.msra.mxu0 %v81
    %383 = vmatprep.subr.mxu0 0.0
    %384 = vmatpush2.msra.mxu0 0.0
    %385 = vmatprep.subr.mxu0 0.0
    %386 = vmatpush2.msra.mxu0 0.0
    %387 = vmatprep.subr.mxu0 0.0
    %388 = vmatpush2.msra.mxu0 0.0
    %389 = vmatprep.subr.mxu0 0.0
    %390 = vmatpush2.msra.mxu0 0.0
    %391 = vmatprep.subr.mxu0 0.0
    %392 = vmatpush2.msra.mxu0 0.0
    %393 = vmatprep.subr.mxu0 0.0
    %394 = vmatpush2.msra.mxu0 0.0
    %395 = vmatprep.subr.mxu0 0.0
    %396 = vmatpush2.msra.mxu0 0.0
    %397 = vmatprep.subr.mxu0 0.0
    %398 = vmatpush2.msra.mxu0 0.0
    %399 = vmatprep.subr.mxu0 0.0
    %400 = vmatpush2.msra.mxu0 0.0
    %401 = vmatprep.subr.mxu0 0.0
    %402 = vmatpush2.msra.mxu0 0.0
    %403 = vmatprep.subr.mxu0 0.0
    %404 = vmatpush2.msra.mxu0 0.0
    %405 = vmatprep.subr.mxu0 0.0
    %406 = vmatpush2.msra.mxu0 0.0
    %407 = vmatprep.subr.mxu0 0.0
    %408 = vmatpush2.msra.mxu0 0.0
    %409 = vmatprep.subr.mxu0 0.0
    %410 = vmatpush2.msra.mxu0 0.0
    %411 = vmatprep.subr.mxu0 0.0
    %412 = vmatpush2.msra.mxu0 0.0
    %413 = vmatprep.subr.mxu0 0.0
    %414 = vmatpush2.msra.mxu0 0.0
    %415 = vmatprep.mubr.f32.mxu0 0.0
    %416 = vmatmul.mubr.f32.gmra.mxu0 %v79
    %v417 = vpop.f32.mrf.mxu0
    %v418 = vadd.f32 %v276, %v417
    %v419 = vpop.f32.mrf.mxu0
    %v420 = vadd.f32 %v278, %v419
    %421 = vdwg.mxu0
    %422 = vmatprep.subr.mxu0 %v144
    %423 = vmatpush1.msra.mxu0 %v143
    %424 = vmatprep.subr.mxu0 %v140
    %425 = vmatpush1.msra.mxu0 %v139
    %426 = vmatprep.subr.mxu0 %v136
    %427 = vmatpush1.msra.mxu0 %v135
    %428 = vmatprep.subr.mxu0 %v132
    %429 = vmatpush1.msra.mxu0 %v131
    %430 = vmatprep.subr.mxu0 %v128
    %431 = vmatpush1.msra.mxu0 %v127
    %432 = vmatprep.subr.mxu0 %v124
    %433 = vmatpush1.msra.mxu0 %v123
    %434 = vmatprep.subr.mxu0 %v120
    %435 = vmatpush1.msra.mxu0 %v119
    %436 = vmatprep.subr.mxu0 %v116
    %437 = vmatpush1.msra.mxu0 %v115
    %438 = vmatprep.subr.mxu0 %v112
    %439 = vmatpush1.msra.mxu0 %v111
    %440 = vmatprep.subr.mxu0 %v108
    %441 = vmatpush1.msra.mxu0 %v107
    %442 = vmatprep.subr.mxu0 %v104
    %443 = vmatpush1.msra.mxu0 %v103
    %444 = vmatprep.subr.mxu0 %v100
    %445 = vmatpush1.msra.mxu0 %v99
    %446 = vmatprep.subr.mxu0 %v96
    %447 = vmatpush1.msra.mxu0 %v95
    %448 = vmatprep.subr.mxu0 %v92
    %449 = vmatpush1.msra.mxu0 %v91
    %450 = vmatprep.subr.mxu0 %v88
    %451 = vmatpush1.msra.mxu0 %v87
    %452 = vmatprep.subr.mxu0 %v84
    %453 = vmatpush1.msra.mxu0 %v83
    %454 = vmatprep.subr.mxu0 0.0
    %455 = vmatpush2.msra.mxu0 0.0
    %456 = vmatprep.subr.mxu0 0.0
    %457 = vmatpush2.msra.mxu0 0.0
    %458 = vmatprep.subr.mxu0 0.0
    %459 = vmatpush2.msra.mxu0 0.0
    %460 = vmatprep.subr.mxu0 0.0
    %461 = vmatpush2.msra.mxu0 0.0
    %462 = vmatprep.subr.mxu0 0.0
    %463 = vmatpush2.msra.mxu0 0.0
    %464 = vmatprep.subr.mxu0 0.0
    %465 = vmatpush2.msra.mxu0 0.0
    %466 = vmatprep.subr.mxu0 0.0
    %467 = vmatpush2.msra.mxu0 0.0
    %468 = vmatprep.subr.mxu0 0.0
    %469 = vmatpush2.msra.mxu0 0.0
    %470 = vmatprep.subr.mxu0 0.0
    %471 = vmatpush2.msra.mxu0 0.0
    %472 = vmatprep.subr.mxu0 0.0
    %473 = vmatpush2.msra.mxu0 0.0
    %474 = vmatprep.subr.mxu0 0.0
    %475 = vmatpush2.msra.mxu0 0.0
    %476 = vmatprep.subr.mxu0 0.0
    %477 = vmatpush2.msra.mxu0 0.0
    %478 = vmatprep.subr.mxu0 0.0
    %479 = vmatpush2.msra.mxu0 0.0
    %480 = vmatprep.subr.mxu0 0.0
    %481 = vmatpush2.msra.mxu0 0.0
    %482 = vmatprep.subr.mxu0 0.0
    %483 = vmatpush2.msra.mxu0 0.0
    %484 = vmatprep.subr.mxu0 0.0
    %485 = vmatpush2.msra.mxu0 0.0
    %486 = vmatprep.mubr.f32.mxu0 0.0
    %487 = vmatmul.mubr.f32.gmra.mxu0 %v79
    %v488 = vpop.f32.mrf.mxu0
    %v489 = vadd.f32 %v347, %v488
    %v490 = vpop.f32.mrf.mxu0
    %v491 = vadd.f32 %v349, %v490
    %492 = vdwg.mxu0
    %v493 = vld [vmem:[%s4] sm:$0xf]
    %v495 = vlaneseq
    %v496 = vshrl.u32 %v495, 7
    %v497 = vsub.s32 0, %v496
    %v498 = vrot.slane %v493, %v497
    %v499 = vlaneseq
    %v500 = vshrl.u32 %v499, 7
    %v501 = vsub.s32 1, %v500
    %v502 = vrot.slane %v493, %v501
    %v503 = vlaneseq
    %v504 = vshrl.u32 %v503, 7
    %v505 = vsub.s32 2, %v504
    %v506 = vrot.slane %v493, %v505
    %v507 = vlaneseq
    %v508 = vshrl.u32 %v507, 7
    %v509 = vsub.s32 3, %v508
    %v510 = vrot.slane %v493, %v509
    %v515 = vadd.f32 %v418, %v498
    %v516 = vadd.f32 %v420, %v502
    %v517 = vadd.f32 %v489, %v506
    %v518 = vadd.f32 %v491, %v510
    %v519 = vmax.f32 %v515, 0.0
    %v520 = vmax.f32 %v516, 0.0
    %v521 = vmax.f32 %v517, 0.0
    %v522 = vmax.f32 %v518, 0.0
    %v523 = vld [vmem:[%s5] sm:$0xf]
    %v525 = vlaneseq
    %v526 = vshrl.u32 %v525, 7
    %v527 = vsub.s32 0, %v526
    %v528 = vrot.slane %v523, %v527
    %v529 = vlaneseq
    %v530 = vshrl.u32 %v529, 7
    %v531 = vsub.s32 1, %v530
    %v532 = vrot.slane %v523, %v531
    %v533 = vlaneseq
    %v534 = vshrl.u32 %v533, 7
    %v535 = vsub.s32 2, %v534
    %v536 = vrot.slane %v523, %v535
    %v537 = vlaneseq
    %v538 = vshrl.u32 %v537, 7
    %v539 = vsub.s32 3, %v538
    %v540 = vrot.slane %v523, %v539
    %v545 = vmul.f32 %v519, %v528
    %v546 = vmul.f32 %v520, %v532
    %v547 = vmul.f32 %v521, %v536
    %v548 = vmul.f32 %v522, %v540
    %v549 = vadd.f32 %v545, %v546
    %v550 = vadd.f32 %v549, %v547
    %v551 = vadd.f32 %v550, %v548
    %552 = vadd.xlane.f32.xlu0 %v551
    %v553 = vpop.xlane.xlu0 %552
    %s554 = sld [smem:[#allocation2]]
    %v555 = vstv %s554
    %v556 = vadd.f32 %v553, %v555
    %v557 = vsub.f32 0.0, %v556
    %v558 = vmul.f32 %v557, 1.442695
    %v559 = vpow.pop %v558
    %v560 = vadd.f32 %v559, 1.0
    %v561 = vrcp.pop %v560
    %v562 = vmul.f32 1.0, %v561
    %v563 = vsub.f32 %v79, %v80
    %v564 = vmul.f32 %v562, %v563
    %v565 = vadd.f32 %v80, %v564
    %566 = vst [vmem:[#allocation11] sm:$0xff] %v565
    // Predicated region
    $region46: #{tpu_custom_call.1} parent=1 // pred_check
      _
    $region47: #{tpu_custom_call.1} parent=1 // pred_check_branch
      %568 = sbr.rel (0) target = $region49
    $region48: #{tpu_custom_call.1} parent=1 // pred_region
      %s570 = ssub.s32 128, 128
      %571 = vsyncadd [#allocation5], %s570
      %s573 = sshll.u32 [#allocation11], 4
      %s574 = int_to_ptr.vmem [resolvable:$true] %s573
      %576 = dma.vmem_to_hbm [thread:$0]  %s574, 128, %s7, [#allocation5]
    $region49: #{tpu_custom_call.1} parent=1 // pred_fallthru
      _
    // Predicated region
    $region50: #{tpu_custom_call.1} parent=1 // pred_check
      _
    $region51: #{tpu_custom_call.1} parent=1 // pred_check_branch
      %578 = sbr.rel (0) target = $region53
    $region52: #{tpu_custom_call.1} parent=1 // pred_region
      %579 = dma.done [#allocation5], 128
    $region53: #{tpu_custom_call.1} parent=1 // pred_fallthru
      _
    %580 = vsyncpa [#allocation4], 1
    %581 = vsyncpa [#allocation7], 1
    %582 = vsyncpa [#allocation10], 1
    %583 = vsyncpa [#allocation5], 1

</llo_original>
